<compile_context>
chip_gen: v5e
topology: v5e:2x2
jax: 0.10.0
libtpu: 0.0.40
codegen_flags: <defaults>
</compile_context>

<pallas_src>
import functools

import jax
import jax.numpy as jnp
from jax import lax
from jax.experimental import pallas as pl
from jax.experimental.pallas import tpu as pltpu


def _dot_nt(a, b):
    """a @ b.T without materializing the transpose (contract last dims)."""
    return lax.dot_general(a, b, (((1,), (1,)), ((), ())),
                           preferred_element_type=jnp.float32)


def _graph_constructor_kernel(x1t_ref, x2t_ref, x1f_ref, x2f_ref,
                              w1t_ref, b1_ref, w2t_ref, b2_ref,
                              adj_ref, *, alpha, k):
    tm, n = adj_ref.shape

    w1t = w1t_ref[...]
    w2t = w2t_ref[...]
    b1 = b1_ref[...]
    b2 = b2_ref[...]

    # lin1 / lin2 (MXU, weights pre-transposed) + tanh(alpha * .)
    #  - tile rows (the TM output rows of this grid step)
    nv1_t = jnp.tanh(alpha * (jnp.dot(x1t_ref[...], w1t,
                                      preferred_element_type=jnp.float32) + b1))
    nv2_t = jnp.tanh(alpha * (jnp.dot(x2t_ref[...], w2t,
                                      preferred_element_type=jnp.float32) + b2))
    #  - all N rows (RHS of the (TM, N) score block); recomputed per tile —
    #    an (N, dim) x (dim, dim) matmul is tiny and keeps the kernel stateless.
    nv1_f = jnp.tanh(alpha * (jnp.dot(x1f_ref[...], w1t,
                                      preferred_element_type=jnp.float32) + b1))
    nv2_f = jnp.tanh(alpha * (jnp.dot(x2f_ref[...], w2t,
                                      preferred_element_type=jnp.float32) + b2))

    # skew-symmetric score block: rows of this tile vs all nodes
    a = _dot_nt(nv1_t, nv2_f) - _dot_nt(nv2_t, nv1_f)
    adj0 = jnp.maximum(jnp.tanh(alpha * a), 0.0)

    # top-k per row (== topk + scatter_(1, t1, 1) then adj * mask).
    # k is a small static constant -> unrolled; ties broken by lowest column
    # (matches jax.lax.top_k; PyTorch's topk tie order is unspecified).
    col_idx = lax.broadcasted_iota(jnp.int32, (tm, n), 1)
    work = adj0
    for _ in range(k):
        rowmax = jnp.max(work, axis=1, keepdims=True)            # XLU reduce
        cand = jnp.where(work == rowmax, col_idx, jnp.int32(n))
        sel_col = jnp.min(cand, axis=1, keepdims=True)           # XLU reduce
        # flag the selected entry in-place; adj0 >= 0 so -1 can never collide.
        work = jnp.where(col_idx == sel_col, -1.0, work)

    adj_ref[...] = jnp.where(work < 0.0, adj0, 0.0)


def graph_constructor_forward(idx, emb1, emb2, w1, b1, w2, b2, *,
                              k, alpha=3.0, row_tile=None):
    """Forward of graph_constructor (static_feat=None path).

    idx: (N,) int32, emb1/emb2: (nnodes, dim), w1/w2: (dim, dim) PyTorch-style
    (out, in) layout, b1/b2: (dim,).  Returns (N, N) float32 sparse adjacency.
    """
    # Embedding lookup is a pure gather -> JAX glue; heavy compute is in-kernel.
    x1 = emb1[idx]
    x2 = emb2[idx]
    n, dim = x1.shape

    # Hoist the PyTorch-style (out, in) -> (in, out) transpose out of the
    # kernel (constant-folded / fused by XLA on the wrapper side).
    w1t = w1.T
    w2t = w2.T
    b1_2d = b1.reshape(1, dim)
    b2_2d = b2.reshape(1, dim)

    if row_tile is None:
        tm = n if n <= 512 else 256        # bound VMEM at large N
    else:
        tm = min(row_tile, n)
    grid = (pl.cdiv(n, tm),)

    kernel = functools.partial(_graph_constructor_kernel, alpha=alpha, k=k)
    return pl.pallas_call(
        kernel,
        out_shape=jax.ShapeDtypeStruct((n, n), jnp.float32),
        grid=grid,
        in_specs=[
            pl.BlockSpec((tm, dim), lambda i: (i, 0)),    # x1 row tile
            pl.BlockSpec((tm, dim), lambda i: (i, 0)),    # x2 row tile
            pl.BlockSpec((n, dim), lambda i: (0, 0)),     # x1 full (all nodes)
            pl.BlockSpec((n, dim), lambda i: (0, 0)),     # x2 full (all nodes)
            pl.BlockSpec((dim, dim), lambda i: (0, 0)),   # W1^T (in, out)
            pl.BlockSpec((1, dim), lambda i: (0, 0)),     # b1
            pl.BlockSpec((dim, dim), lambda i: (0, 0)),   # W2^T (in, out)
            pl.BlockSpec((1, dim), lambda i: (0, 0)),     # b2
        ],
        out_specs=pl.BlockSpec((tm, n), lambda i: (i, 0)),
        compiler_params=pltpu.CompilerParams(
            dimension_semantics=("parallel",),            # row tiles independent
            vmem_limit_bytes=48 * 1024 * 1024,            # safe on v5e/v6e/v7x
        ),
    )(x1, x2, x1, x2, w1t, b1_2d, w2t, b2_2d)

# TODO(synk): static_feat path of the module (lin on static features, x2 = x1)
# would reuse the same kernel with x1 = x2 = static_feat[idx]; not exercised here.


def _reference(idx, emb1, emb2, w1, b1, w2, b2, *, k, alpha):
    x1 = emb1[idx]
    x2 = emb2[idx]
    nv1 = jnp.tanh(alpha * (x1 @ w1.T + b1))
    nv2 = jnp.tanh(alpha * (x2 @ w2.T + b2))
    a = nv1 @ nv2.T - nv2 @ nv1.T
    adj0 = jnp.maximum(jnp.tanh(alpha * a), 0.0)
    _, t1 = jax.lax.top_k(adj0, k)
    n = idx.shape[0]
    mask = jnp.zeros_like(adj0).at[jnp.arange(n)[:, None], t1].set(1.0)
    return adj0 * mask


if __name__ == "__main__":
    def make_params(key, nnodes, dim):
        k1, k2, k3, k4, k5, k6 = jax.random.split(key, 6)
        # nn.Embedding ~ N(0,1); nn.Linear ~ U(-1/sqrt(fan_in), 1/sqrt(fan_in))
        emb1 = jax.random.normal(k1, (nnodes, dim), jnp.float32)
        emb2 = jax.random.normal(k2, (nnodes, dim), jnp.float32)
        bound = 1.0 / (dim ** 0.5)
        w1 = jax.random.uniform(k3, (dim, dim), jnp.float32, -bound, bound)
        b1 = jax.random.uniform(k4, (dim,), jnp.float32, -bound, bound)
        w2 = jax.random.uniform(k5, (dim, dim), jnp.float32, -bound, bound)
        b2 = jax.random.uniform(k6, (dim,), jnp.float32, -bound, bound)
        return emb1, emb2, w1, b1, w2, b2

    alpha = 3.0

    # Shipped small size (single tile, grid=(1,)).
    nnodes, dim, topk = 16, 32, 4
    params = make_params(jax.random.PRNGKey(0), nnodes, dim)
    idx = jnp.arange(nnodes, dtype=jnp.int32)
    adj = graph_constructor_forward(idx, *params, k=topk, alpha=alpha)
    jax.block_until_ready(adj)
    ref = _reference(idx, *params, k=topk, alpha=alpha)
    assert jnp.allclose(adj, ref, atol=1e-5), "mismatch vs reference (N=16)"

    # Larger size exercising the row-tiled multi-step (parallel) grid path.
    nnodes2, dim2, topk2 = 256, 32, 8
    params2 = make_params(jax.random.PRNGKey(1), nnodes2, dim2)
    idx2 = jnp.arange(nnodes2, dtype=jnp.int32)
    adj2 = graph_constructor_forward(idx2, *params2, k=topk2, alpha=alpha,
                                     row_tile=128)
    jax.block_until_ready(adj2)
    ref2 = _reference(idx2, *params2, k=topk2, alpha=alpha)
    assert jnp.allclose(adj2, ref2, atol=1e-5), "mismatch vs reference (N=256)"

    print("KERNEL_OK")
</pallas_src>

<mosaic_0001>
module attributes {stable_mosaic.version = 11 : i64} {
  func.func @_graph_constructor_kernel(%arg0: i32, %arg1: memref<16x32xf32, #tpu.memory_space<vmem>>, %arg2: memref<16x32xf32, #tpu.memory_space<vmem>>, %arg3: memref<16x32xf32, #tpu.memory_space<vmem>>, %arg4: memref<16x32xf32, #tpu.memory_space<vmem>>, %arg5: memref<32x32xf32, #tpu.memory_space<vmem>>, %arg6: memref<1x32xf32, #tpu.memory_space<vmem>>, %arg7: memref<32x32xf32, #tpu.memory_space<vmem>>, %arg8: memref<1x32xf32, #tpu.memory_space<vmem>>, %arg9: memref<16x16xf32, #tpu.memory_space<vmem>>) attributes {dimension_semantics = [#tpu.dimension_semantics<parallel>], iteration_bounds = array<i64: 1>, scalar_prefetch = 0 : i64, scratch_operands = 0 : i64, tpu.core_type = #tpu.core_type<tc>, window_params = [{transform_indices = @transform_0, window_bounds = array<i64: 16, 32>}, {transform_indices = @transform_1, window_bounds = array<i64: 16, 32>}, {pipeline_mode = #tpu.pipeline_mode<synchronous>, transform_indices = @transform_2, window_bounds = array<i64: 16, 32>}, {pipeline_mode = #tpu.pipeline_mode<synchronous>, transform_indices = @transform_3, window_bounds = array<i64: 16, 32>}, {pipeline_mode = #tpu.pipeline_mode<synchronous>, transform_indices = @transform_4, window_bounds = array<i64: 32, 32>}, {pipeline_mode = #tpu.pipeline_mode<synchronous>, transform_indices = @transform_5, window_bounds = array<i64: 1, 32>}, {pipeline_mode = #tpu.pipeline_mode<synchronous>, transform_indices = @transform_6, window_bounds = array<i64: 32, 32>}, {pipeline_mode = #tpu.pipeline_mode<synchronous>, transform_indices = @transform_7, window_bounds = array<i64: 1, 32>}, {transform_indices = @transform_8, window_bounds = array<i64: 16, 16>}]} {
    %c0 = arith.constant 0 : index
    %c0_0 = arith.constant 0 : index
    %0 = vector.load %arg5[%c0, %c0_0] : memref<32x32xf32, #tpu.memory_space<vmem>>, vector<32x32xf32>
    %c0_1 = arith.constant 0 : index
    %c0_2 = arith.constant 0 : index
    %1 = vector.load %arg7[%c0_1, %c0_2] : memref<32x32xf32, #tpu.memory_space<vmem>>, vector<32x32xf32>
    %c0_3 = arith.constant 0 : index
    %c0_4 = arith.constant 0 : index
    %2 = vector.load %arg6[%c0_3, %c0_4] : memref<1x32xf32, #tpu.memory_space<vmem>>, vector<1x32xf32>
    %c0_5 = arith.constant 0 : index
    %c0_6 = arith.constant 0 : index
    %3 = vector.load %arg8[%c0_5, %c0_6] : memref<1x32xf32, #tpu.memory_space<vmem>>, vector<1x32xf32>
    %c0_7 = arith.constant 0 : index
    %c0_8 = arith.constant 0 : index
    %4 = vector.load %arg1[%c0_7, %c0_8] : memref<16x32xf32, #tpu.memory_space<vmem>>, vector<16x32xf32>
    %cst = arith.constant dense<0.000000e+00> : vector<16x32xf32>
    %5 = tpu.matmul %4, %0, %cst {dimension_numbers = #tpu.dot_dimension_numbers<[1], [0], [0], [1], [0, 0, 1, 1], [], []>} : vector<16x32xf32>, vector<32x32xf32>, vector<16x32xf32> -> vector<16x32xf32>
    %6 = vector.broadcast %2 : vector<1x32xf32> to vector<16x32xf32>
    %7 = arith.addf %5, %6 : vector<16x32xf32>
    %cst_9 = arith.constant 3.000000e+00 : f32
    %8 = vector.broadcast %cst_9 : f32 to vector<16x32xf32>
    %9 = arith.mulf %8, %7 : vector<16x32xf32>
    %10 = math.tanh %9 : vector<16x32xf32>
    %c0_10 = arith.constant 0 : index
    %c0_11 = arith.constant 0 : index
    %11 = vector.load %arg2[%c0_10, %c0_11] : memref<16x32xf32, #tpu.memory_space<vmem>>, vector<16x32xf32>
    %cst_12 = arith.constant dense<0.000000e+00> : vector<16x32xf32>
    %12 = tpu.matmul %11, %1, %cst_12 {dimension_numbers = #tpu.dot_dimension_numbers<[1], [0], [0], [1], [0, 0, 1, 1], [], []>} : vector<16x32xf32>, vector<32x32xf32>, vector<16x32xf32> -> vector<16x32xf32>
    %13 = vector.broadcast %3 : vector<1x32xf32> to vector<16x32xf32>
    %14 = arith.addf %12, %13 : vector<16x32xf32>
    %cst_13 = arith.constant 3.000000e+00 : f32
    %15 = vector.broadcast %cst_13 : f32 to vector<16x32xf32>
    %16 = arith.mulf %15, %14 : vector<16x32xf32>
    %17 = math.tanh %16 : vector<16x32xf32>
    %c0_14 = arith.constant 0 : index
    %c0_15 = arith.constant 0 : index
    %18 = vector.load %arg3[%c0_14, %c0_15] : memref<16x32xf32, #tpu.memory_space<vmem>>, vector<16x32xf32>
    %cst_16 = arith.constant dense<0.000000e+00> : vector<16x32xf32>
    %19 = tpu.matmul %18, %0, %cst_16 {dimension_numbers = #tpu.dot_dimension_numbers<[1], [0], [0], [1], [0, 0, 1, 1], [], []>} : vector<16x32xf32>, vector<32x32xf32>, vector<16x32xf32> -> vector<16x32xf32>
    %20 = vector.broadcast %2 : vector<1x32xf32> to vector<16x32xf32>
    %21 = arith.addf %19, %20 : vector<16x32xf32>
    %cst_17 = arith.constant 3.000000e+00 : f32
    %22 = vector.broadcast %cst_17 : f32 to vector<16x32xf32>
    %23 = arith.mulf %22, %21 : vector<16x32xf32>
    %24 = math.tanh %23 : vector<16x32xf32>
    %c0_18 = arith.constant 0 : index
    %c0_19 = arith.constant 0 : index
    %25 = vector.load %arg4[%c0_18, %c0_19] : memref<16x32xf32, #tpu.memory_space<vmem>>, vector<16x32xf32>
    %cst_20 = arith.constant dense<0.000000e+00> : vector<16x32xf32>
    %26 = tpu.matmul %25, %1, %cst_20 {dimension_numbers = #tpu.dot_dimension_numbers<[1], [0], [0], [1], [0, 0, 1, 1], [], []>} : vector<16x32xf32>, vector<32x32xf32>, vector<16x32xf32> -> vector<16x32xf32>
    %27 = vector.broadcast %3 : vector<1x32xf32> to vector<16x32xf32>
    %28 = arith.addf %26, %27 : vector<16x32xf32>
    %cst_21 = arith.constant 3.000000e+00 : f32
    %29 = vector.broadcast %cst_21 : f32 to vector<16x32xf32>
    %30 = arith.mulf %29, %28 : vector<16x32xf32>
    %31 = math.tanh %30 : vector<16x32xf32>
    %cst_22 = arith.constant dense<0.000000e+00> : vector<16x16xf32>
    %32 = tpu.matmul %10, %31, %cst_22 {dimension_numbers = #tpu.dot_dimension_numbers<[1], [1], [0], [0], [0, 0, 1, 0], [], []>} : vector<16x32xf32>, vector<16x32xf32>, vector<16x16xf32> -> vector<16x16xf32>
    %cst_23 = arith.constant dense<0.000000e+00> : vector<16x16xf32>
    %33 = tpu.matmul %17, %24, %cst_23 {dimension_numbers = #tpu.dot_dimension_numbers<[1], [1], [0], [0], [0, 0, 1, 0], [], []>} : vector<16x32xf32>, vector<16x32xf32>, vector<16x16xf32> -> vector<16x16xf32>
    %34 = arith.subf %32, %33 : vector<16x16xf32>
    %cst_24 = arith.constant 3.000000e+00 : f32
    %35 = vector.broadcast %cst_24 : f32 to vector<16x16xf32>
    %36 = arith.mulf %35, %34 : vector<16x16xf32>
    %37 = math.tanh %36 : vector<16x16xf32>
    %cst_25 = arith.constant 0.000000e+00 : f32
    %38 = vector.broadcast %cst_25 : f32 to vector<16x16xf32>
    %39 = arith.maximumf %37, %38 : vector<16x16xf32>
    %40 = tpu.iota {dimensions = array<i32: 1>} : vector<16x16xi32>
    %cst_26 = arith.constant dense<0xFF800000> : vector<16xf32>
    %41 = vector.multi_reduction <maximumf>, %39, %cst_26 [1] : vector<16x16xf32> to vector<16xf32>
    %42 = vector.shape_cast %41 : vector<16xf32> to vector<16x1xf32>
    %43 = vector.broadcast %42 : vector<16x1xf32> to vector<16x16xf32>
    %44 = arith.cmpf oeq, %39, %43 : vector<16x16xf32>
    %c16_i32 = arith.constant 16 : i32
    %45 = vector.broadcast %c16_i32 : i32 to vector<16x16xi32>
    %46 = arith.select %44, %40, %45 : vector<16x16xi1>, vector<16x16xi32>
    %cst_27 = arith.constant dense<2147483647> : vector<16xi32>
    %47 = vector.multi_reduction <minsi>, %46, %cst_27 [1] : vector<16x16xi32> to vector<16xi32>
    %48 = vector.shape_cast %47 : vector<16xi32> to vector<16x1xi32>
    %49 = vector.broadcast %48 : vector<16x1xi32> to vector<16x16xi32>
    %50 = arith.cmpi eq, %40, %49 : vector<16x16xi32>
    %cst_28 = arith.constant -1.000000e+00 : f32
    %51 = vector.broadcast %cst_28 : f32 to vector<16x16xf32>
    %52 = arith.select %50, %51, %39 : vector<16x16xi1>, vector<16x16xf32>
    %cst_29 = arith.constant dense<0xFF800000> : vector<16xf32>
    %53 = vector.multi_reduction <maximumf>, %52, %cst_29 [1] : vector<16x16xf32> to vector<16xf32>
    %54 = vector.shape_cast %53 : vector<16xf32> to vector<16x1xf32>
    %55 = vector.broadcast %54 : vector<16x1xf32> to vector<16x16xf32>
    %56 = arith.cmpf oeq, %52, %55 : vector<16x16xf32>
    %c16_i32_30 = arith.constant 16 : i32
    %57 = vector.broadcast %c16_i32_30 : i32 to vector<16x16xi32>
    %58 = arith.select %56, %40, %57 : vector<16x16xi1>, vector<16x16xi32>
    %cst_31 = arith.constant dense<2147483647> : vector<16xi32>
    %59 = vector.multi_reduction <minsi>, %58, %cst_31 [1] : vector<16x16xi32> to vector<16xi32>
    %60 = vector.shape_cast %59 : vector<16xi32> to vector<16x1xi32>
    %61 = vector.broadcast %60 : vector<16x1xi32> to vector<16x16xi32>
    %62 = arith.cmpi eq, %40, %61 : vector<16x16xi32>
    %cst_32 = arith.constant -1.000000e+00 : f32
    %63 = vector.broadcast %cst_32 : f32 to vector<16x16xf32>
    %64 = arith.select %62, %63, %52 : vector<16x16xi1>, vector<16x16xf32>
    %cst_33 = arith.constant dense<0xFF800000> : vector<16xf32>
    %65 = vector.multi_reduction <maximumf>, %64, %cst_33 [1] : vector<16x16xf32> to vector<16xf32>
    %66 = vector.shape_cast %65 : vector<16xf32> to vector<16x1xf32>
    %67 = vector.broadcast %66 : vector<16x1xf32> to vector<16x16xf32>
    %68 = arith.cmpf oeq, %64, %67 : vector<16x16xf32>
    %c16_i32_34 = arith.constant 16 : i32
    %69 = vector.broadcast %c16_i32_34 : i32 to vector<16x16xi32>
    %70 = arith.select %68, %40, %69 : vector<16x16xi1>, vector<16x16xi32>
    %cst_35 = arith.constant dense<2147483647> : vector<16xi32>
    %71 = vector.multi_reduction <minsi>, %70, %cst_35 [1] : vector<16x16xi32> to vector<16xi32>
    %72 = vector.shape_cast %71 : vector<16xi32> to vector<16x1xi32>
    %73 = vector.broadcast %72 : vector<16x1xi32> to vector<16x16xi32>
    %74 = arith.cmpi eq, %40, %73 : vector<16x16xi32>
    %cst_36 = arith.constant -1.000000e+00 : f32
    %75 = vector.broadcast %cst_36 : f32 to vector<16x16xf32>
    %76 = arith.select %74, %75, %64 : vector<16x16xi1>, vector<16x16xf32>
    %cst_37 = arith.constant dense<0xFF800000> : vector<16xf32>
    %77 = vector.multi_reduction <maximumf>, %76, %cst_37 [1] : vector<16x16xf32> to vector<16xf32>
    %78 = vector.shape_cast %77 : vector<16xf32> to vector<16x1xf32>
    %79 = vector.broadcast %78 : vector<16x1xf32> to vector<16x16xf32>
    %80 = arith.cmpf oeq, %76, %79 : vector<16x16xf32>
    %c16_i32_38 = arith.constant 16 : i32
    %81 = vector.broadcast %c16_i32_38 : i32 to vector<16x16xi32>
    %82 = arith.select %80, %40, %81 : vector<16x16xi1>, vector<16x16xi32>
    %cst_39 = arith.constant dense<2147483647> : vector<16xi32>
    %83 = vector.multi_reduction <minsi>, %82, %cst_39 [1] : vector<16x16xi32> to vector<16xi32>
    %84 = vector.shape_cast %83 : vector<16xi32> to vector<16x1xi32>
    %85 = vector.broadcast %84 : vector<16x1xi32> to vector<16x16xi32>
    %86 = arith.cmpi eq, %40, %85 : vector<16x16xi32>
    %cst_40 = arith.constant -1.000000e+00 : f32
    %87 = vector.broadcast %cst_40 : f32 to vector<16x16xf32>
    %88 = arith.select %86, %87, %76 : vector<16x16xi1>, vector<16x16xf32>
    %cst_41 = arith.constant 0.000000e+00 : f32
    %89 = vector.broadcast %cst_41 : f32 to vector<16x16xf32>
    %90 = arith.cmpf olt, %88, %89 : vector<16x16xf32>
    %cst_42 = arith.constant 0.000000e+00 : f32
    %91 = vector.broadcast %cst_42 : f32 to vector<16x16xf32>
    %92 = arith.select %90, %39, %91 : vector<16x16xi1>, vector<16x16xf32>
    %c0_43 = arith.constant 0 : index
    %c0_44 = arith.constant 0 : index
    %93 = vector.load %arg9[%c0_43, %c0_44] : memref<16x16xf32, #tpu.memory_space<vmem>>, vector<16x16xf32>
    tpu.vector_store %arg9[%c0_43, %c0_44], %92 {strides = array<i32>} : memref<16x16xf32, #tpu.memory_space<vmem>>, vector<16x16xf32>,
    return
  }
  func.func @transform_0(%arg0: i32) -> (i32, i32) {
    %c0_i32 = arith.constant 0 : i32
    %c0_i32_0 = arith.constant 0 : i32
    return %arg0, %c0_i32 : i32, i32
  }
  func.func @transform_1(%arg0: i32) -> (i32, i32) {
    %c0_i32 = arith.constant 0 : i32
    %c0_i32_0 = arith.constant 0 : i32
    return %arg0, %c0_i32 : i32, i32
  }
  func.func @transform_2(%arg0: i32) -> (i32, i32) {
    %c0_i32 = arith.constant 0 : i32
    %c0_i32_0 = arith.constant 0 : i32
    %c0_i32_1 = arith.constant 0 : i32
    return %c0_i32, %c0_i32_0 : i32, i32
  }
  func.func @transform_3(%arg0: i32) -> (i32, i32) {
    %c0_i32 = arith.constant 0 : i32
    %c0_i32_0 = arith.constant 0 : i32
    %c0_i32_1 = arith.constant 0 : i32
    return %c0_i32, %c0_i32_0 : i32, i32
  }
  func.func @transform_4(%arg0: i32) -> (i32, i32) {
    %c0_i32 = arith.constant 0 : i32
    %c0_i32_0 = arith.constant 0 : i32
    %c0_i32_1 = arith.constant 0 : i32
    return %c0_i32, %c0_i32_0 : i32, i32
  }
  func.func @transform_5(%arg0: i32) -> (i32, i32) {
    %c0_i32 = arith.constant 0 : i32
    %c0_i32_0 = arith.constant 0 : i32
    %c0_i32_1 = arith.constant 0 : i32
    return %c0_i32, %c0_i32_0 : i32, i32
  }
  func.func @transform_6(%arg0: i32) -> (i32, i32) {
    %c0_i32 = arith.constant 0 : i32
    %c0_i32_0 = arith.constant 0 : i32
    %c0_i32_1 = arith.constant 0 : i32
    return %c0_i32, %c0_i32_0 : i32, i32
  }
  func.func @transform_7(%arg0: i32) -> (i32, i32) {
    %c0_i32 = arith.constant 0 : i32
    %c0_i32_0 = arith.constant 0 : i32
    %c0_i32_1 = arith.constant 0 : i32
    return %c0_i32, %c0_i32_0 : i32, i32
  }
  func.func @transform_8(%arg0: i32) -> (i32, i32) {
    %c0_i32 = arith.constant 0 : i32
    %c0_i32_0 = arith.constant 0 : i32
    return %arg0, %c0_i32 : i32, i32
  }
}

</mosaic_0001>

<llo_original>
// kernel: tpu_custom_call.1
$region0: #{tpu_custom_call.1}
  #allocation0 [shape = 'u32[]', space=smem, size = 0x4, offset = 0x4, fixed_abs, tag = 'smem constant byte address 0x4 - core index']
  #allocation1 [shape = 'u32[72,128]{1,0:T(1,128)}', space=vmem, size = 0x9000, scoped, tag = 'internal scratch']
  %s0 = inlined_call_operand.hbm [shape: f32[16,32], index: 0, kind: input, shape index: {}]
  %s1 = inlined_call_operand.hbm [shape: f32[16,32], index: 1, kind: input, shape index: {}]
  %s2 = inlined_call_operand.hbm [shape: f32[16,32], index: 2, kind: input, shape index: {}]
  %s3 = inlined_call_operand.hbm [shape: f32[16,32], index: 3, kind: input, shape index: {}]
  %s4 = inlined_call_operand.hbm [shape: f32[32,32], index: 4, kind: input, shape index: {}]
  %s5 = inlined_call_operand.vmem [shape: f32[1,32], index: 5, kind: input, shape index: {}]
  %s6 = inlined_call_operand.hbm [shape: f32[32,32], index: 6, kind: input, shape index: {}]
  %s7 = inlined_call_operand.vmem [shape: f32[1,32], index: 7, kind: input, shape index: {}]
  %s8 = inlined_call_operand.hbm [shape: f32[16,16], index: 8, kind: output, shape index: {}]
  %s9 = sld [smem:[#allocation0]]
  $region66: #{tpu_custom_call.1} parent=0
    _
  %s11 = ssub.s32 1, %s9
  %s12 = scalar_select 0, %s11, %s9
  $region1: #{tpu_custom_call.1} parent=0
    #allocation2 [shape = 'u8[8192]{0}', space=vmem, size = 0x2000, scoped, tag = 'input window, operand 0, single buffered']
    #allocation3 [shape = 's32[1]{0}', space=sflag, size = 0x4, scoped, tag = 'scoped memory for tpu_custom_call.1']
    #allocation4 [shape = 's32[1]{0}', space=sflag, size = 0x4, scoped, tag = 'scoped memory for tpu_custom_call.1']
    #allocation5 [shape = 'u8[8192]{0}', space=vmem, size = 0x2000, scoped, tag = 'input window, operand 1, single buffered']
    #allocation6 [shape = 's32[1]{0}', space=sflag, size = 0x4, scoped, tag = 'scoped memory for tpu_custom_call.1']
    #allocation7 [shape = 'u8[8192]{0}', space=vmem, size = 0x2000, scoped, tag = 'input window, operand 2, single buffered']
    #allocation8 [shape = 'u8[8192]{0}', space=vmem, size = 0x2000, scoped, tag = 'input window, operand 3, single buffered']
    #allocation9 [shape = 's32[1]{0}', space=sflag, size = 0x4, scoped, tag = 'scoped memory for tpu_custom_call.1']
    #allocation10 [shape = 'u8[16384]{0}', space=vmem, size = 0x4000, scoped, tag = 'input window, operand 4, single buffered']
    #allocation11 [shape = 'u8[16384]{0}', space=vmem, size = 0x4000, scoped, tag = 'input window, operand 6, single buffered']
    #allocation12 [shape = 's32[1]{0}', space=sflag, size = 0x4, scoped, tag = 'scoped memory for tpu_custom_call.1']
    #allocation13 [shape = 'u8[8192]{0}', space=vmem, size = 0x2000, scoped, tag = 'output window, operand 0, single buffered']
    %13 = vsyncpa [#allocation3], 0
    %14 = vsyncpa [#allocation6], 0
    %15 = vsyncpa [#allocation9], 0
    %16 = vsyncpa [#allocation12], 0
    %17 = vsyncpa [#allocation4], 0
    // Predicated region
    $region2: #{tpu_custom_call.1} parent=1 // pred_check
      _
    $region3: #{tpu_custom_call.1} parent=1 // pred_check_branch
      %19 = sbr.rel (0) target = $region5
    $region4: #{tpu_custom_call.1} parent=1 // pred_region
      %21 = vsyncadd [#allocation3], 0
      %s22 = sshll.u32 %s0, 4
      %s23 = int_to_ptr.hbm [resolvable:$true] %s22
      %s24 = sshll.u32 [#allocation2], 4
      %s25 = int_to_ptr.vmem [resolvable:$true] %s24
      %30 = dma.hbm_to_vmem [thread:$0]  %s23, 256, %s25, [#allocation3], 128, 128, 8
    $region5: #{tpu_custom_call.1} parent=1 // pred_fallthru
      _
    // Predicated region
    $region6: #{tpu_custom_call.1} parent=1 // pred_check
      _
    $region7: #{tpu_custom_call.1} parent=1 // pred_check_branch
      %32 = sbr.rel (0) target = $region9
    $region8: #{tpu_custom_call.1} parent=1 // pred_region
      %34 = vsyncadd [#allocation6], 0
      %s35 = sshll.u32 %s1, 4
      %s36 = int_to_ptr.hbm [resolvable:$true] %s35
      %s37 = sshll.u32 [#allocation5], 4
      %s38 = int_to_ptr.vmem [resolvable:$true] %s37
      %43 = dma.hbm_to_vmem [thread:$0]  %s36, 256, %s38, [#allocation6], 128, 128, 8
    $region9: #{tpu_custom_call.1} parent=1 // pred_fallthru
      _
    // Predicated region
    $region10: #{tpu_custom_call.1} parent=1 // pred_check
      _
    $region11: #{tpu_custom_call.1} parent=1 // pred_check_branch
      %45 = sbr.rel (0) target = $region13
    $region12: #{tpu_custom_call.1} parent=1 // pred_region
      %47 = vsyncadd [#allocation6], 0
      %s48 = sshll.u32 %s2, 4
      %s49 = int_to_ptr.hbm [resolvable:$true] %s48
      %s50 = sshll.u32 [#allocation7], 4
      %s51 = int_to_ptr.vmem [resolvable:$true] %s50
      %56 = dma.hbm_to_vmem [thread:$0]  %s49, 256, %s51, [#allocation6], 128, 128, 8
    $region13: #{tpu_custom_call.1} parent=1 // pred_fallthru
      _
    // Predicated region
    $region14: #{tpu_custom_call.1} parent=1 // pred_check
      _
    $region15: #{tpu_custom_call.1} parent=1 // pred_check_branch
      %58 = sbr.rel (0) target = $region17
    $region16: #{tpu_custom_call.1} parent=1 // pred_region
      %60 = vsyncadd [#allocation9], 0
      %s61 = sshll.u32 %s3, 4
      %s62 = int_to_ptr.hbm [resolvable:$true] %s61
      %s63 = sshll.u32 [#allocation8], 4
      %s64 = int_to_ptr.vmem [resolvable:$true] %s63
      %69 = dma.hbm_to_vmem [thread:$0]  %s62, 256, %s64, [#allocation9], 128, 128, 8
    $region17: #{tpu_custom_call.1} parent=1 // pred_fallthru
      _
    // Predicated region
    $region18: #{tpu_custom_call.1} parent=1 // pred_check
      _
    $region19: #{tpu_custom_call.1} parent=1 // pred_check_branch
      %71 = sbr.rel (0) target = $region21
    $region20: #{tpu_custom_call.1} parent=1 // pred_region
      %73 = vsyncadd [#allocation9], 0
      %s74 = sshll.u32 %s4, 4
      %s75 = int_to_ptr.hbm [resolvable:$true] %s74
      %s76 = sshll.u32 [#allocation10], 4
      %s77 = int_to_ptr.vmem [resolvable:$true] %s76
      %82 = dma.hbm_to_vmem [thread:$0]  %s75, 512, %s77, [#allocation9], 128, 128, 8
    $region21: #{tpu_custom_call.1} parent=1 // pred_fallthru
      _
    // Predicated region
    $region22: #{tpu_custom_call.1} parent=1 // pred_check
      _
    $region23: #{tpu_custom_call.1} parent=1 // pred_check_branch
      %84 = sbr.rel (0) target = $region25
    $region24: #{tpu_custom_call.1} parent=1 // pred_region
      _
    $region25: #{tpu_custom_call.1} parent=1 // pred_fallthru
      _
    // Predicated region
    $region26: #{tpu_custom_call.1} parent=1 // pred_check
      _
    $region27: #{tpu_custom_call.1} parent=1 // pred_check_branch
      %86 = sbr.rel (0) target = $region29
    $region28: #{tpu_custom_call.1} parent=1 // pred_region
      %88 = vsyncadd [#allocation12], 0
      %s89 = sshll.u32 %s6, 4
      %s90 = int_to_ptr.hbm [resolvable:$true] %s89
      %s91 = sshll.u32 [#allocation11], 4
      %s92 = int_to_ptr.vmem [resolvable:$true] %s91
      %97 = dma.hbm_to_vmem [thread:$0]  %s90, 512, %s92, [#allocation12], 128, 128, 8
    $region29: #{tpu_custom_call.1} parent=1 // pred_fallthru
      _
    // Predicated region
    $region30: #{tpu_custom_call.1} parent=1 // pred_check
      _
    $region31: #{tpu_custom_call.1} parent=1 // pred_check_branch
      %99 = sbr.rel (0) target = $region33
    $region32: #{tpu_custom_call.1} parent=1 // pred_region
      _
    $region33: #{tpu_custom_call.1} parent=1 // pred_fallthru
      _
    // Predicated region
    $region34: #{tpu_custom_call.1} parent=1 // pred_check
      _
    $region35: #{tpu_custom_call.1} parent=1 // pred_check_branch
      %101 = sbr.rel (0) target = $region37
    $region36: #{tpu_custom_call.1} parent=1 // pred_region
      %103 = dma.done [#allocation3], 256
    $region37: #{tpu_custom_call.1} parent=1 // pred_fallthru
      _
    // Predicated region
    $region38: #{tpu_custom_call.1} parent=1 // pred_check
      _
    $region39: #{tpu_custom_call.1} parent=1 // pred_check_branch
      %105 = sbr.rel (0) target = $region41
    $region40: #{tpu_custom_call.1} parent=1 // pred_region
      %107 = dma.done [#allocation6], 256
    $region41: #{tpu_custom_call.1} parent=1 // pred_fallthru
      _
    // Predicated region
    $region42: #{tpu_custom_call.1} parent=1 // pred_check
      _
    $region43: #{tpu_custom_call.1} parent=1 // pred_check_branch
      %109 = sbr.rel (0) target = $region45
    $region44: #{tpu_custom_call.1} parent=1 // pred_region
      %111 = dma.done [#allocation6], 256
    $region45: #{tpu_custom_call.1} parent=1 // pred_fallthru
      _
    // Predicated region
    $region46: #{tpu_custom_call.1} parent=1 // pred_check
      _
    $region47: #{tpu_custom_call.1} parent=1 // pred_check_branch
      %113 = sbr.rel (0) target = $region49
    $region48: #{tpu_custom_call.1} parent=1 // pred_region
      %115 = dma.done [#allocation9], 256
    $region49: #{tpu_custom_call.1} parent=1 // pred_fallthru
      _
    // Predicated region
    $region50: #{tpu_custom_call.1} parent=1 // pred_check
      _
    $region51: #{tpu_custom_call.1} parent=1 // pred_check_branch
      %117 = sbr.rel (0) target = $region53
    $region52: #{tpu_custom_call.1} parent=1 // pred_region
      %119 = dma.done [#allocation9], 512
    $region53: #{tpu_custom_call.1} parent=1 // pred_fallthru
      _
    // Predicated region
    $region54: #{tpu_custom_call.1} parent=1 // pred_check
      _
    $region55: #{tpu_custom_call.1} parent=1 // pred_check_branch
      %121 = sbr.rel (0) target = $region57
    $region56: #{tpu_custom_call.1} parent=1 // pred_region
      %123 = dma.done [#allocation12], 512
    $region57: #{tpu_custom_call.1} parent=1 // pred_fallthru
      _
    %v124 = vld [vmem:[#allocation10] sm:$0xff]
    %v125 = vld [vmem:[#allocation10 + $0x8] sm:$0xff]
    %v126 = vld [vmem:[#allocation10 + $0x10] sm:$0xff]
    %v127 = vld [vmem:[#allocation10 + $0x18] sm:$0xff]
    %v128 = vld [vmem:[#allocation11] sm:$0xff]
    %v129 = vld [vmem:[#allocation11 + $0x8] sm:$0xff]
    %v130 = vld [vmem:[#allocation11 + $0x10] sm:$0xff]
    %v131 = vld [vmem:[#allocation11 + $0x18] sm:$0xff]
    %v132 = vld [vmem:[%s5] sm:$0x1]
    %v133 = vld [vmem:[%s7] sm:$0x1]
    %v134 = vld [vmem:[#allocation2] sm:$0xff]
    %v135 = vld [vmem:[#allocation2 + $0x8] sm:$0xff]
    %v137 = vperm.slane %v132, 0
    %vm139 = vcmask 261120
    %v141 = vsel %vm139, %v134, 0
    %v144 = vsel %vm139, %v135, 0
    %146 = vmatpush.msra.mxu0 0.0
    %147 = vmatpush.msra.mxu0 0.0
    %148 = vmatpush.msra.mxu0 0.0
    %149 = vmatpush.msra.mxu0 0.0
    %150 = vmatpush.msra.mxu0 0.0
    %151 = vmatpush.msra.mxu0 0.0
    %152 = vmatpush.msra.mxu0 0.0
    %153 = vmatpush.msra.mxu0 0.0
    %154 = vmatpush.msra.mxu0 0.0
    %155 = vmatpush.msra.mxu0 0.0
    %156 = vmatpush.msra.mxu0 0.0
    %157 = vmatpush.msra.mxu0 0.0
    %158 = vmatpush.msra.mxu0 %v127
    %159 = vmatpush.msra.mxu0 %v126
    %160 = vmatpush.msra.mxu0 %v125
    %161 = vmatpush.msra.mxu0 %v124
    %162 = vmatmul.f32.gmra.mxu0 %v141
    %v163 = vpop.f32.mrf.mxu0
    %v164 = vadd.f32 %v137, %v163
    %165 = vmatmul.f32.gmra.mxu0 %v144
    %v166 = vpop.f32.mrf.mxu0
    %v167 = vadd.f32 %v137, %v166
    %168 = vdwg.mxu0
    %v169 = vmul.f32 %v164, 3.0
    %v170 = vmul.f32 %v167, 3.0
    %v171 = vtanh.pop %v169
    %v172 = vtanh.pop %v170
    %v173 = vld [vmem:[#allocation5] sm:$0xff]
    %v174 = vld [vmem:[#allocation5 + $0x8] sm:$0xff]
    %v176 = vperm.slane %v133, 0
    %v179 = vsel %vm139, %v173, 0
    %v182 = vsel %vm139, %v174, 0
    %184 = vmatpush.msra.mxu0 0.0
    %185 = vmatpush.msra.mxu0 0.0
    %186 = vmatpush.msra.mxu0 0.0
    %187 = vmatpush.msra.mxu0 0.0
    %188 = vmatpush.msra.mxu0 0.0
    %189 = vmatpush.msra.mxu0 0.0
    %190 = vmatpush.msra.mxu0 0.0
    %191 = vmatpush.msra.mxu0 0.0
    %192 = vmatpush.msra.mxu0 0.0
    %193 = vmatpush.msra.mxu0 0.0
    %194 = vmatpush.msra.mxu0 0.0
    %195 = vmatpush.msra.mxu0 0.0
    %196 = vmatpush.msra.mxu0 %v131
    %197 = vmatpush.msra.mxu0 %v130
    %198 = vmatpush.msra.mxu0 %v129
    %199 = vmatpush.msra.mxu0 %v128
    %200 = vmatmul.f32.gmra.mxu0 %v179
    %v201 = vpop.f32.mrf.mxu0
    %v202 = vadd.f32 %v176, %v201
    %203 = vmatmul.f32.gmra.mxu0 %v182
    %v204 = vpop.f32.mrf.mxu0
    %v205 = vadd.f32 %v176, %v204
    %206 = vdwg.mxu0
    %v207 = vmul.f32 %v202, 3.0
    %v208 = vmul.f32 %v205, 3.0
    %v209 = vtanh.pop %v207
    %v210 = vtanh.pop %v208
    %v211 = vld [vmem:[#allocation7] sm:$0xff]
    %v212 = vld [vmem:[#allocation7 + $0x8] sm:$0xff]
    %v214 = vsel %vm139, %v211, 0
    %v217 = vsel %vm139, %v212, 0
    %219 = vmatpush.msra.mxu0 0.0
    %220 = vmatpush.msra.mxu0 0.0
    %221 = vmatpush.msra.mxu0 0.0
    %222 = vmatpush.msra.mxu0 0.0
    %223 = vmatpush.msra.mxu0 0.0
    %224 = vmatpush.msra.mxu0 0.0
    %225 = vmatpush.msra.mxu0 0.0
    %226 = vmatpush.msra.mxu0 0.0
    %227 = vmatpush.msra.mxu0 0.0
    %228 = vmatpush.msra.mxu0 0.0
    %229 = vmatpush.msra.mxu0 0.0
    %230 = vmatpush.msra.mxu0 0.0
    %231 = vmatpush.msra.mxu0 %v127
    %232 = vmatpush.msra.mxu0 %v126
    %233 = vmatpush.msra.mxu0 %v125
    %234 = vmatpush.msra.mxu0 %v124
    %235 = vmatmul.f32.gmra.mxu0 %v214
    %v236 = vpop.f32.mrf.mxu0
    %v237 = vadd.f32 %v137, %v236
    %238 = vmatmul.f32.gmra.mxu0 %v217
    %v239 = vpop.f32.mrf.mxu0
    %v240 = vadd.f32 %v137, %v239
    %241 = vdwg.mxu0
    %v242 = vmul.f32 %v237, 3.0
    %v243 = vmul.f32 %v240, 3.0
    %v244 = vtanh.pop %v242
    %v245 = vtanh.pop %v243
    %v246 = vld [vmem:[#allocation8] sm:$0xff]
    %v247 = vld [vmem:[#allocation8 + $0x8] sm:$0xff]
    %v249 = vsel %vm139, %v246, 0
    %v252 = vsel %vm139, %v247, 0
    %254 = vmatpush.msra.mxu0 0.0
    %255 = vmatpush.msra.mxu0 0.0
    %256 = vmatpush.msra.mxu0 0.0
    %257 = vmatpush.msra.mxu0 0.0
    %258 = vmatpush.msra.mxu0 0.0
    %259 = vmatpush.msra.mxu0 0.0
    %260 = vmatpush.msra.mxu0 0.0
    %261 = vmatpush.msra.mxu0 0.0
    %262 = vmatpush.msra.mxu0 0.0
    %263 = vmatpush.msra.mxu0 0.0
    %264 = vmatpush.msra.mxu0 0.0
    %265 = vmatpush.msra.mxu0 0.0
    %266 = vmatpush.msra.mxu0 %v131
    %267 = vmatpush.msra.mxu0 %v130
    %268 = vmatpush.msra.mxu0 %v129
    %269 = vmatpush.msra.mxu0 %v128
    %270 = vmatmul.f32.gmra.mxu0 %v249
    %v271 = vpop.f32.mrf.mxu0
    %v272 = vadd.f32 %v176, %v271
    %273 = vmatmul.f32.gmra.mxu0 %v252
    %v274 = vpop.f32.mrf.mxu0
    %v275 = vadd.f32 %v176, %v274
    %276 = vdwg.mxu0
    %v277 = vmul.f32 %v272, 3.0
    %v278 = vmul.f32 %v275, 3.0
    %v279 = vtanh.pop %v277
    %v280 = vtanh.pop %v278
    %v282 = vsel %vm139, %v171, 0
    %v285 = vsel %vm139, %v172, 0
    %v288 = vsel %vm139, %v279, 0
    %v291 = vsel %vm139, %v280, 0
    %293 = vmatpush.xpose.msra.mxu0 0.0
    %294 = vmatpush.xpose.msra.mxu0 0.0
    %295 = vmatpush.xpose.msra.mxu0 0.0
    %296 = vmatpush.xpose.msra.mxu0 0.0
    %297 = vmatpush.xpose.msra.mxu0 0.0
    %298 = vmatpush.xpose.msra.mxu0 0.0
    %299 = vmatpush.xpose.msra.mxu0 0.0
    %300 = vmatpush.xpose.msra.mxu0 0.0
    %301 = vmatpush.xpose.msra.mxu0 0.0
    %302 = vmatpush.xpose.msra.mxu0 0.0
    %303 = vmatpush.xpose.msra.mxu0 0.0
    %304 = vmatpush.xpose.msra.mxu0 0.0
    %305 = vmatpush.xpose.msra.mxu0 0.0
    %306 = vmatpush.xpose.msra.mxu0 0.0
    %307 = vmatpush.xpose.msra.mxu0 %v291
    %308 = vmatpush.xpose.msra.mxu0 %v288
    %309 = vmatmul.f32.gmra.mxu0 %v282
    %v310 = vpop.f32.mrf.mxu0
    %v311 = vadd.f32 0.0, %v310
    %312 = vmatmul.f32.gmra.mxu0 %v285
    %v313 = vpop.f32.mrf.mxu0
    %v314 = vadd.f32 0.0, %v313
    %315 = vdwg.mxu0
    %v317 = vsel %vm139, %v209, 0
    %v320 = vsel %vm139, %v210, 0
    %v323 = vsel %vm139, %v244, 0
    %v326 = vsel %vm139, %v245, 0
    %328 = vmatpush.xpose.msra.mxu0 0.0
    %329 = vmatpush.xpose.msra.mxu0 0.0
    %330 = vmatpush.xpose.msra.mxu0 0.0
    %331 = vmatpush.xpose.msra.mxu0 0.0
    %332 = vmatpush.xpose.msra.mxu0 0.0
    %333 = vmatpush.xpose.msra.mxu0 0.0
    %334 = vmatpush.xpose.msra.mxu0 0.0
    %335 = vmatpush.xpose.msra.mxu0 0.0
    %336 = vmatpush.xpose.msra.mxu0 0.0
    %337 = vmatpush.xpose.msra.mxu0 0.0
    %338 = vmatpush.xpose.msra.mxu0 0.0
    %339 = vmatpush.xpose.msra.mxu0 0.0
    %340 = vmatpush.xpose.msra.mxu0 0.0
    %341 = vmatpush.xpose.msra.mxu0 0.0
    %342 = vmatpush.xpose.msra.mxu0 %v326
    %343 = vmatpush.xpose.msra.mxu0 %v323
    %344 = vmatmul.f32.gmra.mxu0 %v317
    %v345 = vpop.f32.mrf.mxu0
    %v346 = vadd.f32 0.0, %v345
    %347 = vmatmul.f32.gmra.mxu0 %v320
    %v348 = vpop.f32.mrf.mxu0
    %v349 = vadd.f32 0.0, %v348
    %350 = vdwg.mxu0
    %v351 = vsub.f32 %v311, %v346
    %v352 = vsub.f32 %v314, %v349
    %v353 = vmul.f32 %v351, 3.0
    %v354 = vmul.f32 %v352, 3.0
    %v355 = vtanh.pop %v353
    %v356 = vtanh.pop %v354
    %v357 = vmax.f32 %v355, 0.0
    %v358 = vmax.f32 %v356, 0.0
    %v359 = vlaneseq
    %v360 = vand.u32 %v359, 127
    %vm361 = vcmask 130048
    %v362 = vsel %vm361, %v357, -inf
    %363 = vmax.xlane.f32.xlu0 %v362
    %v364 = vpop.xlane.xlu0 %363
    %v365 = vsel %vm361, %v358, -inf
    %366 = vmax.xlane.f32.xlu0 %v365
    %v367 = vpop.xlane.xlu0 %366
    %vm368 = vcmp.eq.f32.partialorder %v357, %v364
    %vm369 = vcmp.eq.f32.partialorder %v358, %v367
    %v370 = vsel %vm368, %v360, 16
    %v371 = vsel %vm369, %v360, 16
    %v372 = vsel %vm361, %v370, 2147483647
    %v373 = vand.u32 %v372, 65535
    %v374 = vshra.s32 %v372, 16
    %v375 = vcvt.s32.f32 %v373
    %v376 = vcvt.s32.f32 %v374
    %377 = vmin.xlane.f32.xlu0 %v376
    %v378 = vpop.xlane.xlu0 %377
    %vm379 = vcmp.eq.f32.partialorder %v376, %v378
    %v380 = vsel %vm379, %v375, inf
    %381 = vmin.xlane.f32.xlu0 %v380
    %v382 = vpop.xlane.xlu0 %381
    %v383 = vcvt.f32.s32 %v382
    %v384 = vcvt.f32.s32 %v378
    %v385 = vshll.u32 %v384, 16
    %v386 = vadd.s32 %v385, %v383
    %v387 = vsel %vm361, %v371, 2147483647
    %v388 = vand.u32 %v387, 65535
    %v389 = vshra.s32 %v387, 16
    %v390 = vcvt.s32.f32 %v388
    %v391 = vcvt.s32.f32 %v389
    %392 = vmin.xlane.f32.xlu0 %v391
    %v393 = vpop.xlane.xlu0 %392
    %vm394 = vcmp.eq.f32.partialorder %v391, %v393
    %v395 = vsel %vm394, %v390, inf
    %396 = vmin.xlane.f32.xlu0 %v395
    %v397 = vpop.xlane.xlu0 %396
    %v398 = vcvt.f32.s32 %v397
    %v399 = vcvt.f32.s32 %v393
    %v400 = vshll.u32 %v399, 16
    %v401 = vadd.s32 %v400, %v398
    %vm402 = vcmp.eq.s32.totalorder %v360, %v386
    %vm403 = vcmp.eq.s32.totalorder %v360, %v401
    %v404 = vsel %vm402, -1.0, %v357
    %v405 = vsel %vm403, -1.0, %v358
    %v406 = vsel %vm361, %v404, -inf
    %407 = vmax.xlane.f32.xlu0 %v406
    %v408 = vpop.xlane.xlu0 %407
    %v409 = vsel %vm361, %v405, -inf
    %410 = vmax.xlane.f32.xlu0 %v409
    %v411 = vpop.xlane.xlu0 %410
    %vm412 = vcmp.eq.f32.partialorder %v404, %v408
    %vm413 = vcmp.eq.f32.partialorder %v405, %v411
    %v414 = vsel %vm412, %v360, 16
    %v415 = vsel %vm413, %v360, 16
    %v416 = vsel %vm361, %v414, 2147483647
    %v417 = vand.u32 %v416, 65535
    %v418 = vshra.s32 %v416, 16
    %v419 = vcvt.s32.f32 %v417
    %v420 = vcvt.s32.f32 %v418
    %421 = vmin.xlane.f32.xlu0 %v420
    %v422 = vpop.xlane.xlu0 %421
    %vm423 = vcmp.eq.f32.partialorder %v420, %v422
    %v424 = vsel %vm423, %v419, inf
    %425 = vmin.xlane.f32.xlu0 %v424
    %v426 = vpop.xlane.xlu0 %425
    %v427 = vcvt.f32.s32 %v426
    %v428 = vcvt.f32.s32 %v422
    %v429 = vshll.u32 %v428, 16
    %v430 = vadd.s32 %v429, %v427
    %v431 = vsel %vm361, %v415, 2147483647
    %v432 = vand.u32 %v431, 65535
    %v433 = vshra.s32 %v431, 16
    %v434 = vcvt.s32.f32 %v432
    %v435 = vcvt.s32.f32 %v433
    %436 = vmin.xlane.f32.xlu0 %v435
    %v437 = vpop.xlane.xlu0 %436
    %vm438 = vcmp.eq.f32.partialorder %v435, %v437
    %v439 = vsel %vm438, %v434, inf
    %440 = vmin.xlane.f32.xlu0 %v439
    %v441 = vpop.xlane.xlu0 %440
    %v442 = vcvt.f32.s32 %v441
    %v443 = vcvt.f32.s32 %v437
    %v444 = vshll.u32 %v443, 16
    %v445 = vadd.s32 %v444, %v442
    %vm446 = vcmp.eq.s32.totalorder %v360, %v430
    %vm447 = vcmp.eq.s32.totalorder %v360, %v445
    %v448 = vsel %vm446, -1.0, %v404
    %v449 = vsel %vm447, -1.0, %v405
    %v450 = vsel %vm361, %v448, -inf
    %451 = vmax.xlane.f32.xlu0 %v450
    %v452 = vpop.xlane.xlu0 %451
    %v453 = vsel %vm361, %v449, -inf
    %454 = vmax.xlane.f32.xlu0 %v453
    %v455 = vpop.xlane.xlu0 %454
    %vm456 = vcmp.eq.f32.partialorder %v448, %v452
    %vm457 = vcmp.eq.f32.partialorder %v449, %v455
    %v458 = vsel %vm456, %v360, 16
    %v459 = vsel %vm457, %v360, 16
    %v460 = vsel %vm361, %v458, 2147483647
    %v461 = vand.u32 %v460, 65535
    %v462 = vshra.s32 %v460, 16
    %v463 = vcvt.s32.f32 %v461
    %v464 = vcvt.s32.f32 %v462
    %465 = vmin.xlane.f32.xlu0 %v464
    %v466 = vpop.xlane.xlu0 %465
    %vm467 = vcmp.eq.f32.partialorder %v464, %v466
    %v468 = vsel %vm467, %v463, inf
    %469 = vmin.xlane.f32.xlu0 %v468
    %v470 = vpop.xlane.xlu0 %469
    %v471 = vcvt.f32.s32 %v470
    %v472 = vcvt.f32.s32 %v466
    %v473 = vshll.u32 %v472, 16
    %v474 = vadd.s32 %v473, %v471
    %v475 = vsel %vm361, %v459, 2147483647
    %v476 = vand.u32 %v475, 65535
    %v477 = vshra.s32 %v475, 16
    %v478 = vcvt.s32.f32 %v476
    %v479 = vcvt.s32.f32 %v477
    %480 = vmin.xlane.f32.xlu0 %v479
    %v481 = vpop.xlane.xlu0 %480
    %vm482 = vcmp.eq.f32.partialorder %v479, %v481
    %v483 = vsel %vm482, %v478, inf
    %484 = vmin.xlane.f32.xlu0 %v483
    %v485 = vpop.xlane.xlu0 %484
    %v486 = vcvt.f32.s32 %v485
    %v487 = vcvt.f32.s32 %v481
    %v488 = vshll.u32 %v487, 16
    %v489 = vadd.s32 %v488, %v486
    %vm490 = vcmp.eq.s32.totalorder %v360, %v474
    %vm491 = vcmp.eq.s32.totalorder %v360, %v489
    %v492 = vsel %vm490, -1.0, %v448
    %v493 = vsel %vm491, -1.0, %v449
    %v494 = vsel %vm361, %v492, -inf
    %495 = vmax.xlane.f32.xlu0 %v494
    %v496 = vpop.xlane.xlu0 %495
    %v497 = vsel %vm361, %v493, -inf
    %498 = vmax.xlane.f32.xlu0 %v497
    %v499 = vpop.xlane.xlu0 %498
    %vm500 = vcmp.eq.f32.partialorder %v492, %v496
    %vm501 = vcmp.eq.f32.partialorder %v493, %v499
    %v502 = vsel %vm500, %v360, 16
    %v503 = vsel %vm501, %v360, 16
    %v504 = vsel %vm361, %v502, 2147483647
    %v505 = vand.u32 %v504, 65535
    %v506 = vshra.s32 %v504, 16
    %v507 = vcvt.s32.f32 %v505
    %v508 = vcvt.s32.f32 %v506
    %509 = vmin.xlane.f32.xlu0 %v508
    %v510 = vpop.xlane.xlu0 %509
    %vm511 = vcmp.eq.f32.partialorder %v508, %v510
    %v512 = vsel %vm511, %v507, inf
    %513 = vmin.xlane.f32.xlu0 %v512
    %v514 = vpop.xlane.xlu0 %513
    %v515 = vcvt.f32.s32 %v514
    %v516 = vcvt.f32.s32 %v510
    %v517 = vshll.u32 %v516, 16
    %v518 = vadd.s32 %v517, %v515
    %v519 = vsel %vm361, %v503, 2147483647
    %v520 = vand.u32 %v519, 65535
    %v521 = vshra.s32 %v519, 16
    %v522 = vcvt.s32.f32 %v520
    %v523 = vcvt.s32.f32 %v521
    %524 = vmin.xlane.f32.xlu0 %v523
    %v525 = vpop.xlane.xlu0 %524
    %vm526 = vcmp.eq.f32.partialorder %v523, %v525
    %v527 = vsel %vm526, %v522, inf
    %528 = vmin.xlane.f32.xlu0 %v527
    %v529 = vpop.xlane.xlu0 %528
    %v530 = vcvt.f32.s32 %v529
    %v531 = vcvt.f32.s32 %v525
    %v532 = vshll.u32 %v531, 16
    %v533 = vadd.s32 %v532, %v530
    %vm534 = vcmp.eq.s32.totalorder %v360, %v518
    %vm535 = vcmp.eq.s32.totalorder %v360, %v533
    %v536 = vsel %vm534, -1.0, %v492
    %v537 = vsel %vm535, -1.0, %v493
    %vm538 = vcmp.lt.f32.partialorder %v536, 0.0
    %vm539 = vcmp.lt.f32.partialorder %v537, 0.0
    %v540 = vsel %vm538, %v357, 0.0
    %v541 = vsel %vm539, %v358, 0.0
    %542 = vst.msk [vmem:[#allocation13] sm:$0xff] %vm361, %v540
    %543 = vst.msk [vmem:[#allocation13 + $0x8] sm:$0xff] %vm361, %v541
    // Predicated region
    $region58: #{tpu_custom_call.1} parent=1 // pred_check
      _
    $region59: #{tpu_custom_call.1} parent=1 // pred_check_branch
      %545 = sbr.rel (0) target = $region61
    $region60: #{tpu_custom_call.1} parent=1 // pred_region
      %547 = vsyncadd [#allocation4], 0
      %s548 = sshll.u32 [#allocation13], 4
      %s549 = int_to_ptr.vmem [resolvable:$true] %s548
      %s550 = sshll.u32 %s8, 4
      %s551 = int_to_ptr.hbm [resolvable:$true] %s550
      %556 = dma.vmem_to_hbm [thread:$0]  %s549, 256, %s551, [#allocation4], 128, 128, 8
    $region61: #{tpu_custom_call.1} parent=1 // pred_fallthru
      _
    // Predicated region
    $region62: #{tpu_custom_call.1} parent=1 // pred_check
      _
    $region63: #{tpu_custom_call.1} parent=1 // pred_check_branch
      %558 = sbr.rel (0) target = $region65
    $region64: #{tpu_custom_call.1} parent=1 // pred_region
      %560 = dma.done [#allocation4], 256
    $region65: #{tpu_custom_call.1} parent=1 // pred_fallthru
      _
    %561 = vsyncpa [#allocation3], 1
    %562 = vsyncpa [#allocation6], 1
    %563 = vsyncpa [#allocation9], 1
    %564 = vsyncpa [#allocation12], 1
    %565 = vsyncpa [#allocation4], 1

</llo_original>
